<compile_context>
chip_gen: v7x
topology: tpu7x:2x2x1
jax: 0.10.0
libtpu: 0.0.40
codegen_flags: <defaults>
</compile_context>

<pallas_src>
import functools

import jax
import jax.numpy as jnp
from jax import lax
from jax.experimental import pallas as pl
from jax.experimental.pallas import tpu as pltpu


# Hash constants (two's-complement int32 views of the usual uint32 constants).
_GOLD = 0x9E3779B9 - (1 << 32)   # golden-ratio seed mixer
_H1 = 0x7FEB352D                 # lowbias32 multiplier 1
_H2 = 0x846CA68B - (1 << 32)     # lowbias32 multiplier 2


def _srl(x, n):
    """Logical right shift on int32."""
    return lax.shift_right_logical(x, jnp.int32(n))


def _decoder_kernel(seed_ref, x_ref, w_ref, b_ref, o_ref, *, dropout_p):
    """Fused: o = dropout_mask * relu(x @ W + b).

    W and b already carry the 1/(1-p) dropout scale (folded at param time),
    so the kernel only zeroes dropped elements.
    """
    # Single bf16 MXU pass, f32 accumulation.
    x = x_ref[...].astype(jnp.bfloat16)
    y = jnp.dot(x, w_ref[...], preferred_element_type=jnp.float32)
    y = y + b_ref[...]                       # (1, N) broadcasts over batch
    y = jnp.maximum(y, 0.0)                  # ReLU

    if dropout_p > 0.0:
        B, N = y.shape
        row = lax.broadcasted_iota(jnp.int32, (B, N), 0)
        col = lax.broadcasted_iota(jnp.int32, (B, N), 1)
        z = row * jnp.int32(N) + col                    # element counter
        z = z ^ (seed_ref[0] * jnp.int32(_GOLD))        # mix in SMEM seed
        z = (z ^ _srl(z, 16)) * jnp.int32(_H1)
        z = (z ^ _srl(z, 15)) * jnp.int32(_H2)
        z = z ^ _srl(z, 16)
        # Integer-domain compare: keep iff top-24-bits >= p * 2^24.
        thresh = jnp.int32(int(dropout_p * (1 << 24)))
        keep = _srl(z, 8) >= thresh
        y = jnp.where(keep, y, 0.0)

    o_ref[...] = y.astype(o_ref.dtype)


def decoder_forward(inner_code, domain_code, w_bf16, b_row, seed, *,
                    dropout_p=0.5):
    """inner_code: [B,F1] f32, domain_code: [B,F2] f32,
       w_bf16: [F1+F2, N] bf16 (transposed torch weight, dropout scale folded),
       b_row:  [1, N] f32 (dropout scale folded),
       seed:   traced int32 scalar (fresh per training step)."""
    B, f1 = inner_code.shape
    Bd, f2 = domain_code.shape
    K, N = w_bf16.shape
    assert B == Bd and f1 + f2 == K and b_row.shape == (1, N)

    # Tiny (B, 32) concat in the wrapper -> one contiguous MXU operand.
    x = jnp.concatenate([inner_code, domain_code], axis=1)
    seed_arr = jnp.asarray(seed, dtype=jnp.int32).reshape((1,))

    kernel = functools.partial(_decoder_kernel, dropout_p=float(dropout_p))

    cost = pl.CostEstimate(
        flops=2 * B * K * N,
        transcendentals=0,
        bytes_accessed=(x.size * 4 + w_bf16.size * 2 + b_row.size * 4
                        + B * N * 4 + 4),
    )

    return pl.pallas_call(
        kernel,
        out_shape=jax.ShapeDtypeStruct((B, N), jnp.float32),
        in_specs=[
            pl.BlockSpec(memory_space=pltpu.MemorySpace.SMEM),   # seed scalar
            pl.BlockSpec(memory_space=pltpu.MemorySpace.VMEM),   # x  (B, K)
            pl.BlockSpec(memory_space=pltpu.MemorySpace.VMEM),   # W  (K, N)
            pl.BlockSpec(memory_space=pltpu.MemorySpace.VMEM),   # b  (1, N)
        ],
        out_specs=pl.BlockSpec(memory_space=pltpu.MemorySpace.VMEM),
        cost_estimate=cost,
    )(seed_arr, x, w_bf16, b_row)


def make_params(key, f1, f2, out_features):
    """Matches torch init: Linear weight <- xavier_normal_, bias <- zeros.
    Returns the f32 [in, out] weight and [out] bias (torch-equivalent)."""
    in_features = f1 + f2
    std = (2.0 / (in_features + out_features)) ** 0.5
    w_torch = jax.random.normal(key, (out_features, in_features),
                                jnp.float32) * std
    return w_torch.T, jnp.zeros((out_features,), jnp.float32)


def prepare_params(w, b, *, dropout_p=0.5):
    """One-time prep: fold the 1/(1-p) dropout scale into W and b
    (relu(s*z) == s*relu(z) for s > 0) and cast W to bf16 for the MXU."""
    scale = 1.0 / (1.0 - dropout_p) if dropout_p > 0.0 else 1.0
    w_k = (w * scale).astype(jnp.bfloat16)
    b_k = (b * scale).astype(jnp.float32).reshape(1, -1)
    return w_k, b_k


if __name__ == "__main__":
    # Small shapes consistent with the module's forward:
    #   inner_code [B, 24] + domain_code [B, 8] -> input_size = 32, out = 2048.
    B, F1, F2, N = 2, 24, 8, 2048
    P = 0.5

    root = jax.random.PRNGKey(0)
    k_w, k_in, k_dom = jax.random.split(root, 3)

    w_f32, b_f32 = make_params(k_w, F1, F2, N)
    w_k, b_k = prepare_params(w_f32, b_f32, dropout_p=P)

    inner_code = jax.random.normal(k_in, (B, F1), jnp.float32)
    domain_code = jax.random.normal(k_dom, (B, F2), jnp.float32)
    seed = jnp.int32(1234)   # traced scalar (no recompile when it changes)

    out = decoder_forward(inner_code, domain_code, w_k, b_k, seed, dropout_p=P)
    out = jax.block_until_ready(out)
    assert out.shape == (B, N) and out.dtype == jnp.float32

    # Reference with the same bf16-cast operands the kernel uses
    # (scale is already folded into w_k / b_k).
    x_bf16 = jnp.concatenate([inner_code, domain_code], axis=1).astype(jnp.bfloat16)
    pre = jnp.maximum(
        jnp.dot(x_bf16, w_k, preferred_element_type=jnp.float32) + b_k, 0.0)

    # 1) every non-zero output element equals the kept-and-scaled activation.
    nz = out != 0.0
    assert bool(jnp.all(jnp.where(nz, jnp.abs(out - pre) < 1e-2, True)))

    # 2) among strictly-positive pre-activations, roughly half are dropped.
    pos = pre > 0.0
    dropped = jnp.logical_and(pos, jnp.logical_not(nz))
    drop_frac = jnp.sum(dropped) / jnp.maximum(jnp.sum(pos), 1)
    assert 0.35 < float(drop_frac) < 0.65

    print("KERNEL_OK")
</pallas_src>

<mosaic_0001>
module attributes {stable_mosaic.version = 11 : i64} {
  func.func @_decoder_kernel(%arg0: memref<1xi32, #tpu.memory_space<smem>>, %arg1: memref<2x32xf32, #tpu.memory_space<vmem>>, %arg2: memref<32x2048xbf16, #tpu.memory_space<vmem>>, %arg3: memref<1x2048xf32, #tpu.memory_space<vmem>>, %arg4: memref<2x2048xf32, #tpu.memory_space<vmem>>) attributes {dimension_semantics = [], scalar_prefetch = 0 : i64, scratch_operands = 0 : i64, tpu.core_type = #tpu.core_type<tc>} {
    %c0 = arith.constant 0 : index
    %c0_0 = arith.constant 0 : index
    %0 = vector.load %arg1[%c0, %c0_0] : memref<2x32xf32, #tpu.memory_space<vmem>>, vector<2x32xf32>
    %1 = arith.truncf %0 : vector<2x32xf32> to vector<2x32xbf16>
    %c0_1 = arith.constant 0 : index
    %c0_2 = arith.constant 0 : index
    %2 = vector.load %arg2[%c0_1, %c0_2] : memref<32x2048xbf16, #tpu.memory_space<vmem>>, vector<32x2048xbf16>
    %cst = arith.constant dense<0.000000e+00> : vector<2x2048xf32>
    %3 = tpu.matmul %1, %2, %cst {dimension_numbers = #tpu.dot_dimension_numbers<[1], [0], [0], [1], [0, 0, 1, 1], [], []>} : vector<2x32xbf16>, vector<32x2048xbf16>, vector<2x2048xf32> -> vector<2x2048xf32>
    %c0_3 = arith.constant 0 : index
    %c0_4 = arith.constant 0 : index
    %4 = vector.load %arg3[%c0_3, %c0_4] : memref<1x2048xf32, #tpu.memory_space<vmem>>, vector<1x2048xf32>
    %5 = vector.broadcast %4 : vector<1x2048xf32> to vector<2x2048xf32>
    %6 = arith.addf %3, %5 : vector<2x2048xf32>
    %cst_5 = arith.constant 0.000000e+00 : f32
    %7 = vector.broadcast %cst_5 : f32 to vector<2x2048xf32>
    %8 = arith.maximumf %6, %7 : vector<2x2048xf32>
    %9 = tpu.iota {dimensions = array<i32: 0>} : vector<2x2048xi32>
    %10 = tpu.iota {dimensions = array<i32: 1>} : vector<2x2048xi32>
    %c2048_i32 = arith.constant 2048 : i32
    %11 = vector.broadcast %c2048_i32 : i32 to vector<2x2048xi32>
    %12 = arith.muli %9, %11 : vector<2x2048xi32>
    %13 = arith.addi %12, %10 : vector<2x2048xi32>
    %c0_6 = arith.constant 0 : index
    %14 = memref.load %arg0[%c0_6] : memref<1xi32, #tpu.memory_space<smem>>
    %c-1640531527_i32 = arith.constant -1640531527 : i32
    %15 = arith.muli %14, %c-1640531527_i32 : i32
    %16 = vector.broadcast %15 : i32 to vector<2x2048xi32>
    %17 = arith.xori %13, %16 : vector<2x2048xi32>
    %c16_i32 = arith.constant 16 : i32
    %18 = vector.broadcast %c16_i32 : i32 to vector<2x2048xi32>
    %19 = arith.shrui %17, %18 : vector<2x2048xi32>
    %20 = arith.xori %17, %19 : vector<2x2048xi32>
    %c2146121005_i32 = arith.constant 2146121005 : i32
    %21 = vector.broadcast %c2146121005_i32 : i32 to vector<2x2048xi32>
    %22 = arith.muli %20, %21 : vector<2x2048xi32>
    %c15_i32 = arith.constant 15 : i32
    %23 = vector.broadcast %c15_i32 : i32 to vector<2x2048xi32>
    %24 = arith.shrui %22, %23 : vector<2x2048xi32>
    %25 = arith.xori %22, %24 : vector<2x2048xi32>
    %c-2073254261_i32 = arith.constant -2073254261 : i32
    %26 = vector.broadcast %c-2073254261_i32 : i32 to vector<2x2048xi32>
    %27 = arith.muli %25, %26 : vector<2x2048xi32>
    %c16_i32_7 = arith.constant 16 : i32
    %28 = vector.broadcast %c16_i32_7 : i32 to vector<2x2048xi32>
    %29 = arith.shrui %27, %28 : vector<2x2048xi32>
    %30 = arith.xori %27, %29 : vector<2x2048xi32>
    %c8_i32 = arith.constant 8 : i32
    %31 = vector.broadcast %c8_i32 : i32 to vector<2x2048xi32>
    %32 = arith.shrui %30, %31 : vector<2x2048xi32>
    %c8388608_i32 = arith.constant 8388608 : i32
    %33 = vector.broadcast %c8388608_i32 : i32 to vector<2x2048xi32>
    %34 = arith.cmpi sge, %32, %33 : vector<2x2048xi32>
    %cst_8 = arith.constant 0.000000e+00 : f32
    %35 = vector.broadcast %cst_8 : f32 to vector<2x2048xf32>
    %36 = arith.select %34, %8, %35 : vector<2x2048xi1>, vector<2x2048xf32>
    %c0_9 = arith.constant 0 : index
    %c0_10 = arith.constant 0 : index
    %37 = vector.load %arg4[%c0_9, %c0_10] : memref<2x2048xf32, #tpu.memory_space<vmem>>, vector<2x2048xf32>
    tpu.vector_store %arg4[%c0_9, %c0_10], %36 {strides = array<i32>} : memref<2x2048xf32, #tpu.memory_space<vmem>>, vector<2x2048xf32>,
    return
  }
}

</mosaic_0001>

<llo_original>
// kernel: tpu_custom_call.1
$region0: #{tpu_custom_call.1}
  #allocation0 [shape = 'u32[]', space=smem, size = 0x4, offset = 0x4, fixed_abs, tag = 'smem constant byte address 0x4 - core index']
  #allocation1 [shape = 'u32[144,128]{1,0:T(1,128)}', space=vmem, size = 0x12000, scoped, tag = 'internal scratch']
  #allocation2 [shape = 's32[1]{0:T(128)S(6)}', space=smem, size = 0x200, scoped, tag = 'scoped memory for tpu_custom_call.1']
  %s0 = inlined_call_operand.<no memory space> [shape: s32[1], index: 0, kind: input, shape index: {}]
  %s1 = inlined_call_operand.vmem [shape: f32[2,32], index: 1, kind: input, shape index: {}]
  %s2 = inlined_call_operand.hbm [shape: bf16[32,2048], index: 2, kind: input, shape index: {}]
  %s3 = inlined_call_operand.hbm [shape: f32[1,2048], index: 3, kind: input, shape index: {}]
  %s4 = inlined_call_operand.hbm [shape: f32[2,2048], index: 4, kind: output, shape index: {}]
  %s5 = sld [smem:[#allocation0]]
  $region34: #{tpu_custom_call.1} parent=0
    _
  %s7 = ssub.s32 1, %s5
  %s8 = scalar_select 0, %s7, %s5
  %9 = sst [smem:[#allocation2]] %s0
  $region1: #{tpu_custom_call.1} parent=0
    #allocation3 [shape = 'u8[131072]{0}', space=vmem, size = 0x20000, scoped, tag = 'input window, operand 2, single buffered']
    #allocation4 [shape = 's32[1]{0}', space=sflag, size = 0x4, scoped, tag = 'scoped memory for tpu_custom_call.1']
    #allocation5 [shape = 's32[1]{0}', space=sflag, size = 0x4, scoped, tag = 'scoped memory for tpu_custom_call.1']
    #allocation6 [shape = 'u8[8192]{0}', space=vmem, size = 0x2000, scoped, tag = 'input window, operand 3, single buffered']
    #allocation7 [shape = 's32[1]{0}', space=sflag, size = 0x4, scoped, tag = 'scoped memory for tpu_custom_call.1']
    #allocation8 [shape = 'u8[16384]{0}', space=vmem, size = 0x4000, scoped, tag = 'output window, operand 0, single buffered']
    %10 = vsyncpa [#allocation4], 0
    %11 = vsyncpa [#allocation7], 0
    %12 = vsyncpa [#allocation5], 0
    // Predicated region
    $region2: #{tpu_custom_call.1} parent=1 // pred_check
      _
    $region3: #{tpu_custom_call.1} parent=1 // pred_check_branch
      %14 = sbr.rel (0) target = $region5
    $region4: #{tpu_custom_call.1} parent=1 // pred_region
      _
    $region5: #{tpu_custom_call.1} parent=1 // pred_fallthru
      _
    // Predicated region
    $region6: #{tpu_custom_call.1} parent=1 // pred_check
      _
    $region7: #{tpu_custom_call.1} parent=1 // pred_check_branch
      %16 = sbr.rel (0) target = $region9
    $region8: #{tpu_custom_call.1} parent=1 // pred_region
      _
    $region9: #{tpu_custom_call.1} parent=1 // pred_fallthru
      _
    // Predicated region
    $region10: #{tpu_custom_call.1} parent=1 // pred_check
      _
    $region11: #{tpu_custom_call.1} parent=1 // pred_check_branch
      %18 = sbr.rel (0) target = $region13
    $region12: #{tpu_custom_call.1} parent=1 // pred_region
      %s20 = ssub.s32 4096, 4096
      %21 = vsyncadd [#allocation4], %s20
      %s22 = sshll.u32 [#allocation3], 4
      %s23 = int_to_ptr.vmem [resolvable:$true] %s22
      %28 = dma.hbm_to_vmem [thread:$0]  %s2, 4096, %s23, [#allocation4], 1024, 1024, 64
    $region13: #{tpu_custom_call.1} parent=1 // pred_fallthru
      _
    // Predicated region
    $region14: #{tpu_custom_call.1} parent=1 // pred_check
      _
    $region15: #{tpu_custom_call.1} parent=1 // pred_check_branch
      %30 = sbr.rel (0) target = $region17
    $region16: #{tpu_custom_call.1} parent=1 // pred_region
      %s32 = ssub.s32 256, 256
      %33 = vsyncadd [#allocation7], %s32
      %s35 = sshll.u32 [#allocation6], 4
      %s36 = int_to_ptr.vmem [resolvable:$true] %s35
      %38 = dma.hbm_to_vmem [thread:$0]  %s3, 256, %s36, [#allocation7]
    $region17: #{tpu_custom_call.1} parent=1 // pred_fallthru
      _
    // Predicated region
    $region18: #{tpu_custom_call.1} parent=1 // pred_check
      _
    $region19: #{tpu_custom_call.1} parent=1 // pred_check_branch
      %40 = sbr.rel (0) target = $region21
    $region20: #{tpu_custom_call.1} parent=1 // pred_region
      %41 = dma.done [#allocation4], 4096
    $region21: #{tpu_custom_call.1} parent=1 // pred_fallthru
      _
    // Predicated region
    $region22: #{tpu_custom_call.1} parent=1 // pred_check
      _
    $region23: #{tpu_custom_call.1} parent=1 // pred_check_branch
      %43 = sbr.rel (0) target = $region25
    $region24: #{tpu_custom_call.1} parent=1 // pred_region
      %44 = dma.done [#allocation7], 256
    $region25: #{tpu_custom_call.1} parent=1 // pred_fallthru
      _
    %v46 = vld [vmem:[%s1] sm:$0x3]
    %v47 = vpack.c.bf16 %v46, %v46
    %v48 = vld [vmem:[#allocation3] sm:$0xff]
    %v49 = vld [vmem:[#allocation3 + $0x8] sm:$0xff]
    %v50 = vld [vmem:[#allocation3 + $0x10] sm:$0xff]
    %v51 = vld [vmem:[#allocation3 + $0x18] sm:$0xff]
    %v52 = vld [vmem:[#allocation3 + $0x20] sm:$0xff]
    %v53 = vld [vmem:[#allocation3 + $0x28] sm:$0xff]
    %v54 = vld [vmem:[#allocation3 + $0x30] sm:$0xff]
    %v55 = vld [vmem:[#allocation3 + $0x38] sm:$0xff]
    %v56 = vld [vmem:[#allocation3 + $0x40] sm:$0xff]
    %v57 = vld [vmem:[#allocation3 + $0x48] sm:$0xff]
    %v58 = vld [vmem:[#allocation3 + $0x50] sm:$0xff]
    %v59 = vld [vmem:[#allocation3 + $0x58] sm:$0xff]
    %v60 = vld [vmem:[#allocation3 + $0x60] sm:$0xff]
    %v61 = vld [vmem:[#allocation3 + $0x68] sm:$0xff]
    %v62 = vld [vmem:[#allocation3 + $0x70] sm:$0xff]
    %v63 = vld [vmem:[#allocation3 + $0x78] sm:$0xff]
    %v64 = vld [vmem:[#allocation3 + $0x80] sm:$0xff]
    %v65 = vld [vmem:[#allocation3 + $0x88] sm:$0xff]
    %v66 = vld [vmem:[#allocation3 + $0x90] sm:$0xff]
    %v67 = vld [vmem:[#allocation3 + $0x98] sm:$0xff]
    %v68 = vld [vmem:[#allocation3 + $0xa0] sm:$0xff]
    %v69 = vld [vmem:[#allocation3 + $0xa8] sm:$0xff]
    %v70 = vld [vmem:[#allocation3 + $0xb0] sm:$0xff]
    %v71 = vld [vmem:[#allocation3 + $0xb8] sm:$0xff]
    %v72 = vld [vmem:[#allocation3 + $0xc0] sm:$0xff]
    %v73 = vld [vmem:[#allocation3 + $0xc8] sm:$0xff]
    %v74 = vld [vmem:[#allocation3 + $0xd0] sm:$0xff]
    %v75 = vld [vmem:[#allocation3 + $0xd8] sm:$0xff]
    %v76 = vld [vmem:[#allocation3 + $0xe0] sm:$0xff]
    %v77 = vld [vmem:[#allocation3 + $0xe8] sm:$0xff]
    %v78 = vld [vmem:[#allocation3 + $0xf0] sm:$0xff]
    %v79 = vld [vmem:[#allocation3 + $0xf8] sm:$0xff]
    %v80 = vld [vmem:[#allocation6] sm:$0xff]
    %v81 = vld [vmem:[#allocation6 + $0x8] sm:$0xff]
    %v84 = vlaneseq
    %v85 = vshrl.u32 %v84, 7
    %v86 = vsub.s32 0, %v85
    %v87 = vrot.slane %v80, %v86
    %v88 = vlaneseq
    %v89 = vshrl.u32 %v88, 7
    %v90 = vsub.s32 1, %v89
    %v91 = vrot.slane %v80, %v90
    %v92 = vlaneseq
    %v93 = vshrl.u32 %v92, 7
    %v94 = vsub.s32 2, %v93
    %v95 = vrot.slane %v80, %v94
    %v96 = vlaneseq
    %v97 = vshrl.u32 %v96, 7
    %v98 = vsub.s32 3, %v97
    %v99 = vrot.slane %v80, %v98
    %v100 = vlaneseq
    %v101 = vshrl.u32 %v100, 7
    %v102 = vsub.s32 4, %v101
    %v103 = vrot.slane %v80, %v102
    %v104 = vlaneseq
    %v105 = vshrl.u32 %v104, 7
    %v106 = vsub.s32 5, %v105
    %v107 = vrot.slane %v80, %v106
    %v108 = vlaneseq
    %v109 = vshrl.u32 %v108, 7
    %v110 = vsub.s32 6, %v109
    %v111 = vrot.slane %v80, %v110
    %v112 = vlaneseq
    %v113 = vshrl.u32 %v112, 7
    %v114 = vsub.s32 7, %v113
    %v115 = vrot.slane %v80, %v114
    %v116 = vlaneseq
    %v117 = vshrl.u32 %v116, 7
    %v118 = vsub.s32 0, %v117
    %v119 = vrot.slane %v81, %v118
    %v120 = vlaneseq
    %v121 = vshrl.u32 %v120, 7
    %v122 = vsub.s32 1, %v121
    %v123 = vrot.slane %v81, %v122
    %v124 = vlaneseq
    %v125 = vshrl.u32 %v124, 7
    %v126 = vsub.s32 2, %v125
    %v127 = vrot.slane %v81, %v126
    %v128 = vlaneseq
    %v129 = vshrl.u32 %v128, 7
    %v130 = vsub.s32 3, %v129
    %v131 = vrot.slane %v81, %v130
    %v132 = vlaneseq
    %v133 = vshrl.u32 %v132, 7
    %v134 = vsub.s32 4, %v133
    %v135 = vrot.slane %v81, %v134
    %v136 = vlaneseq
    %v137 = vshrl.u32 %v136, 7
    %v138 = vsub.s32 5, %v137
    %v139 = vrot.slane %v81, %v138
    %v140 = vlaneseq
    %v141 = vshrl.u32 %v140, 7
    %v142 = vsub.s32 6, %v141
    %v143 = vrot.slane %v81, %v142
    %v144 = vlaneseq
    %v145 = vshrl.u32 %v144, 7
    %v146 = vsub.s32 7, %v145
    %v147 = vrot.slane %v81, %v146
    %v196 = vunpack.c.l.b16 %v48
    %v197 = vunpack.c.h.b16 %v48
    %v198 = vunpack.c.l.b16 %v49
    %v199 = vunpack.c.h.b16 %v49
    %v200 = vunpack.c.l.b16 %v50
    %v201 = vunpack.c.h.b16 %v50
    %v202 = vunpack.c.l.b16 %v51
    %v203 = vunpack.c.h.b16 %v51
    %v204 = vunpack.c.l.b16 %v52
    %v205 = vunpack.c.h.b16 %v52
    %v206 = vunpack.c.l.b16 %v53
    %v207 = vunpack.c.h.b16 %v53
    %v208 = vunpack.c.l.b16 %v54
    %v209 = vunpack.c.h.b16 %v54
    %v210 = vunpack.c.l.b16 %v55
    %v211 = vunpack.c.h.b16 %v55
    %v212 = vunpack.c.l.b16 %v56
    %v213 = vunpack.c.h.b16 %v56
    %v214 = vunpack.c.l.b16 %v57
    %v215 = vunpack.c.h.b16 %v57
    %v216 = vunpack.c.l.b16 %v58
    %v217 = vunpack.c.h.b16 %v58
    %v218 = vunpack.c.l.b16 %v59
    %v219 = vunpack.c.h.b16 %v59
    %v220 = vunpack.c.l.b16 %v60
    %v221 = vunpack.c.h.b16 %v60
    %v222 = vunpack.c.l.b16 %v61
    %v223 = vunpack.c.h.b16 %v61
    %v224 = vunpack.c.l.b16 %v62
    %v225 = vunpack.c.h.b16 %v62
    %v226 = vunpack.c.l.b16 %v63
    %v227 = vunpack.c.h.b16 %v63
    %v228 = vunpack.c.l.b16 %v64
    %v229 = vunpack.c.h.b16 %v64
    %v230 = vunpack.c.l.b16 %v65
    %v231 = vunpack.c.h.b16 %v65
    %v232 = vunpack.c.l.b16 %v66
    %v233 = vunpack.c.h.b16 %v66
    %v234 = vunpack.c.l.b16 %v67
    %v235 = vunpack.c.h.b16 %v67
    %v236 = vunpack.c.l.b16 %v68
    %v237 = vunpack.c.h.b16 %v68
    %v238 = vunpack.c.l.b16 %v69
    %v239 = vunpack.c.h.b16 %v69
    %v240 = vunpack.c.l.b16 %v70
    %v241 = vunpack.c.h.b16 %v70
    %v242 = vunpack.c.l.b16 %v71
    %v243 = vunpack.c.h.b16 %v71
    %v244 = vunpack.c.l.b16 %v72
    %v245 = vunpack.c.h.b16 %v72
    %v246 = vunpack.c.l.b16 %v73
    %v247 = vunpack.c.h.b16 %v73
    %v248 = vunpack.c.l.b16 %v74
    %v249 = vunpack.c.h.b16 %v74
    %v250 = vunpack.c.l.b16 %v75
    %v251 = vunpack.c.h.b16 %v75
    %v252 = vunpack.c.l.b16 %v76
    %v253 = vunpack.c.h.b16 %v76
    %v254 = vunpack.c.l.b16 %v77
    %v255 = vunpack.c.h.b16 %v77
    %v256 = vunpack.c.l.b16 %v78
    %v257 = vunpack.c.h.b16 %v78
    %v258 = vunpack.c.l.b16 %v79
    %v259 = vunpack.c.h.b16 %v79
    %v260 = vpack.c.b16 %v212, %v196
    %v261 = vpack.c.b16 %v213, %v197
    %v262 = vpack.c.b16 %v214, %v198
    %v263 = vpack.c.b16 %v215, %v199
    %v264 = vpack.c.b16 %v216, %v200
    %v265 = vpack.c.b16 %v217, %v201
    %v266 = vpack.c.b16 %v218, %v202
    %v267 = vpack.c.b16 %v219, %v203
    %v268 = vpack.c.b16 %v220, %v204
    %v269 = vpack.c.b16 %v221, %v205
    %v270 = vpack.c.b16 %v222, %v206
    %v271 = vpack.c.b16 %v223, %v207
    %v272 = vpack.c.b16 %v224, %v208
    %v273 = vpack.c.b16 %v225, %v209
    %v274 = vpack.c.b16 %v226, %v210
    %v275 = vpack.c.b16 %v227, %v211
    %v276 = vpack.c.b16 %v244, %v228
    %v277 = vpack.c.b16 %v245, %v229
    %v278 = vpack.c.b16 %v246, %v230
    %v279 = vpack.c.b16 %v247, %v231
    %v280 = vpack.c.b16 %v248, %v232
    %v281 = vpack.c.b16 %v249, %v233
    %v282 = vpack.c.b16 %v250, %v234
    %v283 = vpack.c.b16 %v251, %v235
    %v284 = vpack.c.b16 %v252, %v236
    %v285 = vpack.c.b16 %v253, %v237
    %v286 = vpack.c.b16 %v254, %v238
    %v287 = vpack.c.b16 %v255, %v239
    %v288 = vpack.c.b16 %v256, %v240
    %v289 = vpack.c.b16 %v257, %v241
    %v290 = vpack.c.b16 %v258, %v242
    %v291 = vpack.c.b16 %v259, %v243
    %vm324 = vcmask 261120
    %v326 = vsel %vm324, %v47, 0
    %328 = vmatprep.subr.bf16.mxu0 %v261
    %329 = vmatpush1.bf16.msra.mxu0 %v260
    %330 = vmatprep.subr.bf16.mxu0 %v277
    %331 = vmatpush1.bf16.msra.mxu0 %v276
    %332 = vmatprep.subr.bf16.mxu0 0
    %333 = vmatpush1.bf16.msra.mxu0 0
    %334 = vmatprep.subr.bf16.mxu0 0
    %335 = vmatpush1.bf16.msra.mxu0 0
    %336 = vmatprep.subr.bf16.mxu0 0
    %337 = vmatpush1.bf16.msra.mxu0 0
    %338 = vmatprep.subr.bf16.mxu0 0
    %339 = vmatpush1.bf16.msra.mxu0 0
    %340 = vmatprep.subr.bf16.mxu0 0
    %341 = vmatpush1.bf16.msra.mxu0 0
    %342 = vmatprep.subr.bf16.mxu0 0
    %343 = vmatpush1.bf16.msra.mxu0 0
    %344 = vmatprep.subr.bf16.mxu0 0
    %345 = vmatpush1.bf16.msra.mxu0 0
    %346 = vmatprep.subr.bf16.mxu0 0
    %347 = vmatpush1.bf16.msra.mxu0 0
    %348 = vmatprep.subr.bf16.mxu0 0
    %349 = vmatpush1.bf16.msra.mxu0 0
    %350 = vmatprep.subr.bf16.mxu0 0
    %351 = vmatpush1.bf16.msra.mxu0 0
    %352 = vmatprep.subr.bf16.mxu0 0
    %353 = vmatpush1.bf16.msra.mxu0 0
    %354 = vmatprep.subr.bf16.mxu0 0
    %355 = vmatpush1.bf16.msra.mxu0 0
    %356 = vmatprep.subr.bf16.mxu0 0
    %357 = vmatpush1.bf16.msra.mxu0 0
    %358 = vmatprep.subr.bf16.mxu0 0
    %359 = vmatpush1.bf16.msra.mxu0 0
    %360 = vmatprep.mubr.bf16.mxu0 0
    %361 = vmatmul.mubr.bf16.gmra.mrb[0].mxu0 %v326
    %v362 = vpop.f32.mrb[0].mxu0
    %v363 = vadd.f32 %v87, %v362
    %v364 = vpop.f32.mrb[0].mxu0
    %v365 = vadd.f32 %v91, %v364
    %v366 = vpop.f32.mrb[0].mxu0
    %v367 = vpop.f32.mrb[0].mxu0
    %368 = vdwg.mxu0
    %369 = vmatprep.subr.bf16.mxu0 %v263
    %370 = vmatpush1.bf16.msra.mxu0 %v262
    %371 = vmatprep.subr.bf16.mxu0 %v279
    %372 = vmatpush1.bf16.msra.mxu0 %v278
    %373 = vmatprep.subr.bf16.mxu0 0
    %374 = vmatpush1.bf16.msra.mxu0 0
    %375 = vmatprep.subr.bf16.mxu0 0
    %376 = vmatpush1.bf16.msra.mxu0 0
    %377 = vmatprep.subr.bf16.mxu0 0
    %378 = vmatpush1.bf16.msra.mxu0 0
    %379 = vmatprep.subr.bf16.mxu0 0
    %380 = vmatpush1.bf16.msra.mxu0 0
    %381 = vmatprep.subr.bf16.mxu0 0
    %382 = vmatpush1.bf16.msra.mxu0 0
    %383 = vmatprep.subr.bf16.mxu0 0
    %384 = vmatpush1.bf16.msra.mxu0 0
    %385 = vmatprep.subr.bf16.mxu0 0
    %386 = vmatpush1.bf16.msra.mxu0 0
    %387 = vmatprep.subr.bf16.mxu0 0
    %388 = vmatpush1.bf16.msra.mxu0 0
    %389 = vmatprep.subr.bf16.mxu0 0
    %390 = vmatpush1.bf16.msra.mxu0 0
    %391 = vmatprep.subr.bf16.mxu0 0
    %392 = vmatpush1.bf16.msra.mxu0 0
    %393 = vmatprep.subr.bf16.mxu0 0
    %394 = vmatpush1.bf16.msra.mxu0 0
    %395 = vmatprep.subr.bf16.mxu0 0
    %396 = vmatpush1.bf16.msra.mxu0 0
    %397 = vmatprep.subr.bf16.mxu0 0
    %398 = vmatpush1.bf16.msra.mxu0 0
    %399 = vmatprep.subr.bf16.mxu0 0
    %400 = vmatpush1.bf16.msra.mxu0 0
    %401 = vmatprep.mubr.bf16.mxu0 0
    %402 = vmatmul.mubr.bf16.gmra.mrb[0].mxu0 %v326
    %v403 = vpop.f32.mrb[0].mxu0
    %v404 = vadd.f32 %v95, %v403
    %v405 = vpop.f32.mrb[0].mxu0
    %v406 = vadd.f32 %v99, %v405
    %v407 = vpop.f32.mrb[0].mxu0
    %v408 = vpop.f32.mrb[0].mxu0
    %409 = vdwg.mxu0
    %410 = vmatprep.subr.bf16.mxu0 %v265
    %411 = vmatpush1.bf16.msra.mxu0 %v264
    %412 = vmatprep.subr.bf16.mxu0 %v281
    %413 = vmatpush1.bf16.msra.mxu0 %v280
    %414 = vmatprep.subr.bf16.mxu0 0
    %415 = vmatpush1.bf16.msra.mxu0 0
    %416 = vmatprep.subr.bf16.mxu0 0
    %417 = vmatpush1.bf16.msra.mxu0 0
    %418 = vmatprep.subr.bf16.mxu0 0
    %419 = vmatpush1.bf16.msra.mxu0 0
    %420 = vmatprep.subr.bf16.mxu0 0
    %421 = vmatpush1.bf16.msra.mxu0 0
    %422 = vmatprep.subr.bf16.mxu0 0
    %423 = vmatpush1.bf16.msra.mxu0 0
    %424 = vmatprep.subr.bf16.mxu0 0
    %425 = vmatpush1.bf16.msra.mxu0 0
    %426 = vmatprep.subr.bf16.mxu0 0
    %427 = vmatpush1.bf16.msra.mxu0 0
    %428 = vmatprep.subr.bf16.mxu0 0
    %429 = vmatpush1.bf16.msra.mxu0 0
    %430 = vmatprep.subr.bf16.mxu0 0
    %431 = vmatpush1.bf16.msra.mxu0 0
    %432 = vmatprep.subr.bf16.mxu0 0
    %433 = vmatpush1.bf16.msra.mxu0 0
    %434 = vmatprep.subr.bf16.mxu0 0
    %435 = vmatpush1.bf16.msra.mxu0 0
    %436 = vmatprep.subr.bf16.mxu0 0
    %437 = vmatpush1.bf16.msra.mxu0 0
    %438 = vmatprep.subr.bf16.mxu0 0
    %439 = vmatpush1.bf16.msra.mxu0 0
    %440 = vmatprep.subr.bf16.mxu0 0
    %441 = vmatpush1.bf16.msra.mxu0 0
    %442 = vmatprep.mubr.bf16.mxu0 0
    %443 = vmatmul.mubr.bf16.gmra.mrb[0].mxu0 %v326
    %v444 = vpop.f32.mrb[0].mxu0
    %v445 = vadd.f32 %v103, %v444
    %v446 = vpop.f32.mrb[0].mxu0
    %v447 = vadd.f32 %v107, %v446
    %v448 = vpop.f32.mrb[0].mxu0
    %v449 = vpop.f32.mrb[0].mxu0
    %450 = vdwg.mxu0
    %451 = vmatprep.subr.bf16.mxu0 %v267
    %452 = vmatpush1.bf16.msra.mxu0 %v266
    %453 = vmatprep.subr.bf16.mxu0 %v283
    %454 = vmatpush1.bf16.msra.mxu0 %v282
    %455 = vmatprep.subr.bf16.mxu0 0
    %456 = vmatpush1.bf16.msra.mxu0 0
    %457 = vmatprep.subr.bf16.mxu0 0
    %458 = vmatpush1.bf16.msra.mxu0 0
    %459 = vmatprep.subr.bf16.mxu0 0
    %460 = vmatpush1.bf16.msra.mxu0 0
    %461 = vmatprep.subr.bf16.mxu0 0
    %462 = vmatpush1.bf16.msra.mxu0 0
    %463 = vmatprep.subr.bf16.mxu0 0
    %464 = vmatpush1.bf16.msra.mxu0 0
    %465 = vmatprep.subr.bf16.mxu0 0
    %466 = vmatpush1.bf16.msra.mxu0 0
    %467 = vmatprep.subr.bf16.mxu0 0
    %468 = vmatpush1.bf16.msra.mxu0 0
    %469 = vmatprep.subr.bf16.mxu0 0
    %470 = vmatpush1.bf16.msra.mxu0 0
    %471 = vmatprep.subr.bf16.mxu0 0
    %472 = vmatpush1.bf16.msra.mxu0 0
    %473 = vmatprep.subr.bf16.mxu0 0
    %474 = vmatpush1.bf16.msra.mxu0 0
    %475 = vmatprep.subr.bf16.mxu0 0
    %476 = vmatpush1.bf16.msra.mxu0 0
    %477 = vmatprep.subr.bf16.mxu0 0
    %478 = vmatpush1.bf16.msra.mxu0 0
    %479 = vmatprep.subr.bf16.mxu0 0
    %480 = vmatpush1.bf16.msra.mxu0 0
    %481 = vmatprep.subr.bf16.mxu0 0
    %482 = vmatpush1.bf16.msra.mxu0 0
    %483 = vmatprep.mubr.bf16.mxu0 0
    %484 = vmatmul.mubr.bf16.gmra.mrb[0].mxu0 %v326
    %v485 = vpop.f32.mrb[0].mxu0
    %v486 = vadd.f32 %v111, %v485
    %v487 = vpop.f32.mrb[0].mxu0
    %v488 = vadd.f32 %v115, %v487
    %v489 = vpop.f32.mrb[0].mxu0
    %v490 = vpop.f32.mrb[0].mxu0
    %491 = vdwg.mxu0
    %492 = vmatprep.subr.bf16.mxu0 %v269
    %493 = vmatpush1.bf16.msra.mxu0 %v268
    %494 = vmatprep.subr.bf16.mxu0 %v285
    %495 = vmatpush1.bf16.msra.mxu0 %v284
    %496 = vmatprep.subr.bf16.mxu0 0
    %497 = vmatpush1.bf16.msra.mxu0 0
    %498 = vmatprep.subr.bf16.mxu0 0
    %499 = vmatpush1.bf16.msra.mxu0 0
    %500 = vmatprep.subr.bf16.mxu0 0
    %501 = vmatpush1.bf16.msra.mxu0 0
    %502 = vmatprep.subr.bf16.mxu0 0
    %503 = vmatpush1.bf16.msra.mxu0 0
    %504 = vmatprep.subr.bf16.mxu0 0
    %505 = vmatpush1.bf16.msra.mxu0 0
    %506 = vmatprep.subr.bf16.mxu0 0
    %507 = vmatpush1.bf16.msra.mxu0 0
    %508 = vmatprep.subr.bf16.mxu0 0
    %509 = vmatpush1.bf16.msra.mxu0 0
    %510 = vmatprep.subr.bf16.mxu0 0
    %511 = vmatpush1.bf16.msra.mxu0 0
    %512 = vmatprep.subr.bf16.mxu0 0
    %513 = vmatpush1.bf16.msra.mxu0 0
    %514 = vmatprep.subr.bf16.mxu0 0
    %515 = vmatpush1.bf16.msra.mxu0 0
    %516 = vmatprep.subr.bf16.mxu0 0
    %517 = vmatpush1.bf16.msra.mxu0 0
    %518 = vmatprep.subr.bf16.mxu0 0
    %519 = vmatpush1.bf16.msra.mxu0 0
    %520 = vmatprep.subr.bf16.mxu0 0
    %521 = vmatpush1.bf16.msra.mxu0 0
    %522 = vmatprep.subr.bf16.mxu0 0
    %523 = vmatpush1.bf16.msra.mxu0 0
    %524 = vmatprep.mubr.bf16.mxu0 0
    %525 = vmatmul.mubr.bf16.gmra.mrb[0].mxu0 %v326
    %v526 = vpop.f32.mrb[0].mxu0
    %v527 = vadd.f32 %v119, %v526
    %v528 = vpop.f32.mrb[0].mxu0
    %v529 = vadd.f32 %v123, %v528
    %v530 = vpop.f32.mrb[0].mxu0
    %v531 = vpop.f32.mrb[0].mxu0
    %532 = vdwg.mxu0
    %533 = vmatprep.subr.bf16.mxu0 %v271
    %534 = vmatpush1.bf16.msra.mxu0 %v270
    %535 = vmatprep.subr.bf16.mxu0 %v287
    %536 = vmatpush1.bf16.msra.mxu0 %v286
    %537 = vmatprep.subr.bf16.mxu0 0
    %538 = vmatpush1.bf16.msra.mxu0 0
    %539 = vmatprep.subr.bf16.mxu0 0
    %540 = vmatpush1.bf16.msra.mxu0 0
    %541 = vmatprep.subr.bf16.mxu0 0
    %542 = vmatpush1.bf16.msra.mxu0 0
    %543 = vmatprep.subr.bf16.mxu0 0
    %544 = vmatpush1.bf16.msra.mxu0 0
    %545 = vmatprep.subr.bf16.mxu0 0
    %546 = vmatpush1.bf16.msra.mxu0 0
    %547 = vmatprep.subr.bf16.mxu0 0
    %548 = vmatpush1.bf16.msra.mxu0 0
    %549 = vmatprep.subr.bf16.mxu0 0
    %550 = vmatpush1.bf16.msra.mxu0 0
    %551 = vmatprep.subr.bf16.mxu0 0
    %552 = vmatpush1.bf16.msra.mxu0 0
    %553 = vmatprep.subr.bf16.mxu0 0
    %554 = vmatpush1.bf16.msra.mxu0 0
    %555 = vmatprep.subr.bf16.mxu0 0
    %556 = vmatpush1.bf16.msra.mxu0 0
    %557 = vmatprep.subr.bf16.mxu0 0
    %558 = vmatpush1.bf16.msra.mxu0 0
    %559 = vmatprep.subr.bf16.mxu0 0
    %560 = vmatpush1.bf16.msra.mxu0 0
    %561 = vmatprep.subr.bf16.mxu0 0
    %562 = vmatpush1.bf16.msra.mxu0 0
    %563 = vmatprep.subr.bf16.mxu0 0
    %564 = vmatpush1.bf16.msra.mxu0 0
    %565 = vmatprep.mubr.bf16.mxu0 0
    %566 = vmatmul.mubr.bf16.gmra.mrb[0].mxu0 %v326
    %v567 = vpop.f32.mrb[0].mxu0
    %v568 = vadd.f32 %v127, %v567
    %v569 = vpop.f32.mrb[0].mxu0
    %v570 = vadd.f32 %v131, %v569
    %v571 = vpop.f32.mrb[0].mxu0
    %v572 = vpop.f32.mrb[0].mxu0
    %573 = vdwg.mxu0
    %574 = vmatprep.subr.bf16.mxu0 %v273
    %575 = vmatpush1.bf16.msra.mxu0 %v272
    %576 = vmatprep.subr.bf16.mxu0 %v289
    %577 = vmatpush1.bf16.msra.mxu0 %v288
    %578 = vmatprep.subr.bf16.mxu0 0
    %579 = vmatpush1.bf16.msra.mxu0 0
    %580 = vmatprep.subr.bf16.mxu0 0
    %581 = vmatpush1.bf16.msra.mxu0 0
    %582 = vmatprep.subr.bf16.mxu0 0
    %583 = vmatpush1.bf16.msra.mxu0 0
    %584 = vmatprep.subr.bf16.mxu0 0
    %585 = vmatpush1.bf16.msra.mxu0 0
    %586 = vmatprep.subr.bf16.mxu0 0
    %587 = vmatpush1.bf16.msra.mxu0 0
    %588 = vmatprep.subr.bf16.mxu0 0
    %589 = vmatpush1.bf16.msra.mxu0 0
    %590 = vmatprep.subr.bf16.mxu0 0
    %591 = vmatpush1.bf16.msra.mxu0 0
    %592 = vmatprep.subr.bf16.mxu0 0
    %593 = vmatpush1.bf16.msra.mxu0 0
    %594 = vmatprep.subr.bf16.mxu0 0
    %595 = vmatpush1.bf16.msra.mxu0 0
    %596 = vmatprep.subr.bf16.mxu0 0
    %597 = vmatpush1.bf16.msra.mxu0 0
    %598 = vmatprep.subr.bf16.mxu0 0
    %599 = vmatpush1.bf16.msra.mxu0 0
    %600 = vmatprep.subr.bf16.mxu0 0
    %601 = vmatpush1.bf16.msra.mxu0 0
    %602 = vmatprep.subr.bf16.mxu0 0
    %603 = vmatpush1.bf16.msra.mxu0 0
    %604 = vmatprep.subr.bf16.mxu0 0
    %605 = vmatpush1.bf16.msra.mxu0 0
    %606 = vmatprep.mubr.bf16.mxu0 0
    %607 = vmatmul.mubr.bf16.gmra.mrb[0].mxu0 %v326
    %v608 = vpop.f32.mrb[0].mxu0
    %v609 = vadd.f32 %v135, %v608
    %v610 = vpop.f32.mrb[0].mxu0
    %v611 = vadd.f32 %v139, %v610
    %v612 = vpop.f32.mrb[0].mxu0
    %v613 = vpop.f32.mrb[0].mxu0
    %614 = vdwg.mxu0
    %615 = vmatprep.subr.bf16.mxu0 %v275
    %616 = vmatpush1.bf16.msra.mxu0 %v274
    %617 = vmatprep.subr.bf16.mxu0 %v291
    %618 = vmatpush1.bf16.msra.mxu0 %v290
    %619 = vmatprep.subr.bf16.mxu0 0
    %620 = vmatpush1.bf16.msra.mxu0 0
    %621 = vmatprep.subr.bf16.mxu0 0
    %622 = vmatpush1.bf16.msra.mxu0 0
    %623 = vmatprep.subr.bf16.mxu0 0
    %624 = vmatpush1.bf16.msra.mxu0 0
    %625 = vmatprep.subr.bf16.mxu0 0
    %626 = vmatpush1.bf16.msra.mxu0 0
    %627 = vmatprep.subr.bf16.mxu0 0
    %628 = vmatpush1.bf16.msra.mxu0 0
    %629 = vmatprep.subr.bf16.mxu0 0
    %630 = vmatpush1.bf16.msra.mxu0 0
    %631 = vmatprep.subr.bf16.mxu0 0
    %632 = vmatpush1.bf16.msra.mxu0 0
    %633 = vmatprep.subr.bf16.mxu0 0
    %634 = vmatpush1.bf16.msra.mxu0 0
    %635 = vmatprep.subr.bf16.mxu0 0
    %636 = vmatpush1.bf16.msra.mxu0 0
    %637 = vmatprep.subr.bf16.mxu0 0
    %638 = vmatpush1.bf16.msra.mxu0 0
    %639 = vmatprep.subr.bf16.mxu0 0
    %640 = vmatpush1.bf16.msra.mxu0 0
    %641 = vmatprep.subr.bf16.mxu0 0
    %642 = vmatpush1.bf16.msra.mxu0 0
    %643 = vmatprep.subr.bf16.mxu0 0
    %644 = vmatpush1.bf16.msra.mxu0 0
    %645 = vmatprep.subr.bf16.mxu0 0
    %646 = vmatpush1.bf16.msra.mxu0 0
    %647 = vmatprep.mubr.bf16.mxu0 0
    %648 = vmatmul.mubr.bf16.gmra.mrb[0].mxu0 %v326
    %v649 = vpop.f32.mrb[0].mxu0
    %v650 = vadd.f32 %v143, %v649
    %v651 = vpop.f32.mrb[0].mxu0
    %v652 = vadd.f32 %v147, %v651
    %v653 = vpop.f32.mrb[0].mxu0
    %v654 = vpop.f32.mrb[0].mxu0
    %655 = vdwg.mxu0
    %v656 = vmax.f32 %v363, 0.0
    %v657 = vmax.f32 %v365, 0.0
    %v658 = vmax.f32 %v404, 0.0
    %v659 = vmax.f32 %v406, 0.0
    %v660 = vmax.f32 %v445, 0.0
    %v661 = vmax.f32 %v447, 0.0
    %v662 = vmax.f32 %v486, 0.0
    %v663 = vmax.f32 %v488, 0.0
    %v664 = vmax.f32 %v527, 0.0
    %v665 = vmax.f32 %v529, 0.0
    %v666 = vmax.f32 %v568, 0.0
    %v667 = vmax.f32 %v570, 0.0
    %v668 = vmax.f32 %v609, 0.0
    %v669 = vmax.f32 %v611, 0.0
    %v670 = vmax.f32 %v650, 0.0
    %v671 = vmax.f32 %v652, 0.0
    %v672 = vlaneseq
    %v673 = vshrl.u32 %v672, 7
    %v674 = vlaneseq
    %v675 = vand.u32 %v674, 127
    %v676 = vadd.s32 %v675, 128
    %v677 = vadd.s32 %v675, 256
    %v678 = vadd.s32 %v675, 384
    %v679 = vadd.s32 %v675, 512
    %v680 = vadd.s32 %v675, 640
    %v681 = vadd.s32 %v675, 768
    %v682 = vadd.s32 %v675, 896
    %v683 = vadd.s32 %v675, 1024
    %v684 = vadd.s32 %v675, 1152
    %v685 = vadd.s32 %v675, 1280
    %v686 = vadd.s32 %v675, 1408
    %v687 = vadd.s32 %v675, 1536
    %v688 = vadd.s32 %v675, 1664
    %v689 = vadd.s32 %v675, 1792
    %v690 = vadd.s32 %v675, 1920
    %v691 = vmul.u32 %v673, 2048
    %v692 = vadd.s32 %v691, %v675
    %v693 = vadd.s32 %v691, %v676
    %v694 = vadd.s32 %v691, %v677
    %v695 = vadd.s32 %v691, %v678
    %v696 = vadd.s32 %v691, %v679
    %v697 = vadd.s32 %v691, %v680
    %v698 = vadd.s32 %v691, %v681
    %v699 = vadd.s32 %v691, %v682
    %v700 = vadd.s32 %v691, %v683
    %v701 = vadd.s32 %v691, %v684
    %v702 = vadd.s32 %v691, %v685
    %v703 = vadd.s32 %v691, %v686
    %v704 = vadd.s32 %v691, %v687
    %v705 = vadd.s32 %v691, %v688
    %v706 = vadd.s32 %v691, %v689
    %v707 = vadd.s32 %v691, %v690
    %s708 = sld [smem:[#allocation2]]
    %s709 = smul.u32 %s708, 2654435769
    %v710 = vstv %s709
    %v711 = vxor.u32 %v692, %v710
    %v712 = vxor.u32 %v693, %v710
    %v713 = vxor.u32 %v694, %v710
    %v714 = vxor.u32 %v695, %v710
    %v715 = vxor.u32 %v696, %v710
    %v716 = vxor.u32 %v697, %v710
    %v717 = vxor.u32 %v698, %v710
    %v718 = vxor.u32 %v699, %v710
    %v719 = vxor.u32 %v700, %v710
    %v720 = vxor.u32 %v701, %v710
    %v721 = vxor.u32 %v702, %v710
    %v722 = vxor.u32 %v703, %v710
    %v723 = vxor.u32 %v704, %v710
    %v724 = vxor.u32 %v705, %v710
    %v725 = vxor.u32 %v706, %v710
    %v726 = vxor.u32 %v707, %v710
    %v727 = vshrl.u32 %v711, 16
    %v728 = vshrl.u32 %v712, 16
    %v729 = vshrl.u32 %v713, 16
    %v730 = vshrl.u32 %v714, 16
    %v731 = vshrl.u32 %v715, 16
    %v732 = vshrl.u32 %v716, 16
    %v733 = vshrl.u32 %v717, 16
    %v734 = vshrl.u32 %v718, 16
    %v735 = vshrl.u32 %v719, 16
    %v736 = vshrl.u32 %v720, 16
    %v737 = vshrl.u32 %v721, 16
    %v738 = vshrl.u32 %v722, 16
    %v739 = vshrl.u32 %v723, 16
    %v740 = vshrl.u32 %v724, 16
    %v741 = vshrl.u32 %v725, 16
    %v742 = vshrl.u32 %v726, 16
    %v743 = vxor.u32 %v711, %v727
    %v744 = vxor.u32 %v712, %v728
    %v745 = vxor.u32 %v713, %v729
    %v746 = vxor.u32 %v714, %v730
    %v747 = vxor.u32 %v715, %v731
    %v748 = vxor.u32 %v716, %v732
    %v749 = vxor.u32 %v717, %v733
    %v750 = vxor.u32 %v718, %v734
    %v751 = vxor.u32 %v719, %v735
    %v752 = vxor.u32 %v720, %v736
    %v753 = vxor.u32 %v721, %v737
    %v754 = vxor.u32 %v722, %v738
    %v755 = vxor.u32 %v723, %v739
    %v756 = vxor.u32 %v724, %v740
    %v757 = vxor.u32 %v725, %v741
    %v758 = vxor.u32 %v726, %v742
    %v759 = vmul.u32 %v743, 2146121005
    %v760 = vmul.u32 %v744, 2146121005
    %v761 = vmul.u32 %v745, 2146121005
    %v762 = vmul.u32 %v746, 2146121005
    %v763 = vmul.u32 %v747, 2146121005
    %v764 = vmul.u32 %v748, 2146121005
    %v765 = vmul.u32 %v749, 2146121005
    %v766 = vmul.u32 %v750, 2146121005
    %v767 = vmul.u32 %v751, 2146121005
    %v768 = vmul.u32 %v752, 2146121005
    %v769 = vmul.u32 %v753, 2146121005
    %v770 = vmul.u32 %v754, 2146121005
    %v771 = vmul.u32 %v755, 2146121005
    %v772 = vmul.u32 %v756, 2146121005
    %v773 = vmul.u32 %v757, 2146121005
    %v774 = vmul.u32 %v758, 2146121005
    %v775 = vshrl.u32 %v759, 15
    %v776 = vshrl.u32 %v760, 15
    %v777 = vshrl.u32 %v761, 15
    %v778 = vshrl.u32 %v762, 15
    %v779 = vshrl.u32 %v763, 15
    %v780 = vshrl.u32 %v764, 15
    %v781 = vshrl.u32 %v765, 15
    %v782 = vshrl.u32 %v766, 15
    %v783 = vshrl.u32 %v767, 15
    %v784 = vshrl.u32 %v768, 15
    %v785 = vshrl.u32 %v769, 15
    %v786 = vshrl.u32 %v770, 15
    %v787 = vshrl.u32 %v771, 15
    %v788 = vshrl.u32 %v772, 15
    %v789 = vshrl.u32 %v773, 15
    %v790 = vshrl.u32 %v774, 15
    %v791 = vxor.u32 %v759, %v775
    %v792 = vxor.u32 %v760, %v776
    %v793 = vxor.u32 %v761, %v777
    %v794 = vxor.u32 %v762, %v778
    %v795 = vxor.u32 %v763, %v779
    %v796 = vxor.u32 %v764, %v780
    %v797 = vxor.u32 %v765, %v781
    %v798 = vxor.u32 %v766, %v782
    %v799 = vxor.u32 %v767, %v783
    %v800 = vxor.u32 %v768, %v784
    %v801 = vxor.u32 %v769, %v785
    %v802 = vxor.u32 %v770, %v786
    %v803 = vxor.u32 %v771, %v787
    %v804 = vxor.u32 %v772, %v788
    %v805 = vxor.u32 %v773, %v789
    %v806 = vxor.u32 %v774, %v790
    %v807 = vmul.u32 %v791, 2221713035
    %v808 = vmul.u32 %v792, 2221713035
    %v809 = vmul.u32 %v793, 2221713035
    %v810 = vmul.u32 %v794, 2221713035
    %v811 = vmul.u32 %v795, 2221713035
    %v812 = vmul.u32 %v796, 2221713035
    %v813 = vmul.u32 %v797, 2221713035
    %v814 = vmul.u32 %v798, 2221713035
    %v815 = vmul.u32 %v799, 2221713035
    %v816 = vmul.u32 %v800, 2221713035
    %v817 = vmul.u32 %v801, 2221713035
    %v818 = vmul.u32 %v802, 2221713035
    %v819 = vmul.u32 %v803, 2221713035
    %v820 = vmul.u32 %v804, 2221713035
    %v821 = vmul.u32 %v805, 2221713035
    %v822 = vmul.u32 %v806, 2221713035
    %v823 = vshrl.u32 %v807, 16
    %v824 = vshrl.u32 %v808, 16
    %v825 = vshrl.u32 %v809, 16
    %v826 = vshrl.u32 %v810, 16
    %v827 = vshrl.u32 %v811, 16
    %v828 = vshrl.u32 %v812, 16
    %v829 = vshrl.u32 %v813, 16
    %v830 = vshrl.u32 %v814, 16
    %v831 = vshrl.u32 %v815, 16
    %v832 = vshrl.u32 %v816, 16
    %v833 = vshrl.u32 %v817, 16
    %v834 = vshrl.u32 %v818, 16
    %v835 = vshrl.u32 %v819, 16
    %v836 = vshrl.u32 %v820, 16
    %v837 = vshrl.u32 %v821, 16
    %v838 = vshrl.u32 %v822, 16
    %v839 = vxor.u32 %v807, %v823
    %v840 = vxor.u32 %v808, %v824
    %v841 = vxor.u32 %v809, %v825
    %v842 = vxor.u32 %v810, %v826
    %v843 = vxor.u32 %v811, %v827
    %v844 = vxor.u32 %v812, %v828
    %v845 = vxor.u32 %v813, %v829
    %v846 = vxor.u32 %v814, %v830
    %v847 = vxor.u32 %v815, %v831
    %v848 = vxor.u32 %v816, %v832
    %v849 = vxor.u32 %v817, %v833
    %v850 = vxor.u32 %v818, %v834
    %v851 = vxor.u32 %v819, %v835
    %v852 = vxor.u32 %v820, %v836
    %v853 = vxor.u32 %v821, %v837
    %v854 = vxor.u32 %v822, %v838
    %v855 = vshrl.u32 %v839, 8
    %v856 = vshrl.u32 %v840, 8
    %v857 = vshrl.u32 %v841, 8
    %v858 = vshrl.u32 %v842, 8
    %v859 = vshrl.u32 %v843, 8
    %v860 = vshrl.u32 %v844, 8
    %v861 = vshrl.u32 %v845, 8
    %v862 = vshrl.u32 %v846, 8
    %v863 = vshrl.u32 %v847, 8
    %v864 = vshrl.u32 %v848, 8
    %v865 = vshrl.u32 %v849, 8
    %v866 = vshrl.u32 %v850, 8
    %v867 = vshrl.u32 %v851, 8
    %v868 = vshrl.u32 %v852, 8
    %v869 = vshrl.u32 %v853, 8
    %v870 = vshrl.u32 %v854, 8
    %vm871 = vcmp.ge.s32.totalorder %v855, 8388608
    %vm872 = vcmp.ge.s32.totalorder %v856, 8388608
    %vm873 = vcmp.ge.s32.totalorder %v857, 8388608
    %vm874 = vcmp.ge.s32.totalorder %v858, 8388608
    %vm875 = vcmp.ge.s32.totalorder %v859, 8388608
    %vm876 = vcmp.ge.s32.totalorder %v860, 8388608
    %vm877 = vcmp.ge.s32.totalorder %v861, 8388608
    %vm878 = vcmp.ge.s32.totalorder %v862, 8388608
    %vm879 = vcmp.ge.s32.totalorder %v863, 8388608
    %vm880 = vcmp.ge.s32.totalorder %v864, 8388608
    %vm881 = vcmp.ge.s32.totalorder %v865, 8388608
    %vm882 = vcmp.ge.s32.totalorder %v866, 8388608
    %vm883 = vcmp.ge.s32.totalorder %v867, 8388608
    %vm884 = vcmp.ge.s32.totalorder %v868, 8388608
    %vm885 = vcmp.ge.s32.totalorder %v869, 8388608
    %vm886 = vcmp.ge.s32.totalorder %v870, 8388608
    %v887 = vsel %vm871, %v656, 0.0
    %v888 = vsel %vm872, %v657, 0.0
    %v889 = vsel %vm873, %v658, 0.0
    %v890 = vsel %vm874, %v659, 0.0
    %v891 = vsel %vm875, %v660, 0.0
    %v892 = vsel %vm876, %v661, 0.0
    %v893 = vsel %vm877, %v662, 0.0
    %v894 = vsel %vm878, %v663, 0.0
    %v895 = vsel %vm879, %v664, 0.0
    %v896 = vsel %vm880, %v665, 0.0
    %v897 = vsel %vm881, %v666, 0.0
    %v898 = vsel %vm882, %v667, 0.0
    %v899 = vsel %vm883, %v668, 0.0
    %v900 = vsel %vm884, %v669, 0.0
    %v901 = vsel %vm885, %v670, 0.0
    %v902 = vsel %vm886, %v671, 0.0
    %v919 = vcombine.low %v887, %v888
    %v920 = vcombine.low %v889, %v890
    %v922 = vunpack.c.l.s4 1983009808
    %v923 = vunpack.c.0.s8 %v922
    %v924 = vlaneseq
    %v925 = vshrl.u32 %v924, 7
    %v926 = vsub.s32 %v923, %v925
    %v927 = vrot.slane %v919, %v926
    %v929 = vunpack.c.l.s4 1983009808
    %v930 = vunpack.c.0.s8 %v929
    %v931 = vlaneseq
    %v932 = vshrl.u32 %v931, 7
    %v933 = vsub.s32 %v930, %v932
    %v934 = vrot.slane %v920, %v933
    %v935 = vcombine.low %v927, %v934
    %v936 = vcombine.low %v891, %v892
    %v937 = vcombine.low %v893, %v894
    %v939 = vunpack.c.l.s4 1983009808
    %v940 = vunpack.c.0.s8 %v939
    %v941 = vlaneseq
    %v942 = vshrl.u32 %v941, 7
    %v943 = vsub.s32 %v940, %v942
    %v944 = vrot.slane %v936, %v943
    %v946 = vunpack.c.l.s4 1983009808
    %v947 = vunpack.c.0.s8 %v946
    %v948 = vlaneseq
    %v949 = vshrl.u32 %v948, 7
    %v950 = vsub.s32 %v947, %v949
    %v951 = vrot.slane %v937, %v950
    %v952 = vcombine.low %v944, %v951
    %v953 = vcombine.low %v895, %v896
    %v954 = vcombine.low %v897, %v898
    %v956 = vunpack.c.l.s4 1983009808
    %v957 = vunpack.c.0.s8 %v956
    %v958 = vlaneseq
    %v959 = vshrl.u32 %v958, 7
    %v960 = vsub.s32 %v957, %v959
    %v961 = vrot.slane %v953, %v960
    %v963 = vunpack.c.l.s4 1983009808
    %v964 = vunpack.c.0.s8 %v963
    %v965 = vlaneseq
    %v966 = vshrl.u32 %v965, 7
    %v967 = vsub.s32 %v964, %v966
    %v968 = vrot.slane %v954, %v967
    %v969 = vcombine.low %v961, %v968
    %v970 = vcombine.low %v899, %v900
    %v971 = vcombine.low %v901, %v902
    %v973 = vunpack.c.l.s4 1983009808
    %v974 = vunpack.c.0.s8 %v973
    %v975 = vlaneseq
    %v976 = vshrl.u32 %v975, 7
    %v977 = vsub.s32 %v974, %v976
    %v978 = vrot.slane %v970, %v977
    %v980 = vunpack.c.l.s4 1983009808
    %v981 = vunpack.c.0.s8 %v980
    %v982 = vlaneseq
    %v983 = vshrl.u32 %v982, 7
    %v984 = vsub.s32 %v981, %v983
    %v985 = vrot.slane %v971, %v984
    %v986 = vcombine.low %v978, %v985
    %991 = vst [vmem:[#allocation8] sm:$0xff] %v935
    %992 = vst [vmem:[#allocation8 + $0x8] sm:$0xff] %v952
    %993 = vst [vmem:[#allocation8 + $0x10] sm:$0xff] %v969
    %994 = vst [vmem:[#allocation8 + $0x18] sm:$0xff] %v986
    // Predicated region
    $region26: #{tpu_custom_call.1} parent=1 // pred_check
      _
    $region27: #{tpu_custom_call.1} parent=1 // pred_check_branch
      %996 = sbr.rel (0) target = $region29
    $region28: #{tpu_custom_call.1} parent=1 // pred_region
      %s998 = ssub.s32 512, 512
      %999 = vsyncadd [#allocation5], %s998
      %s1001 = sshll.u32 [#allocation8], 4
      %s1002 = int_to_ptr.vmem [resolvable:$true] %s1001
      %1004 = dma.vmem_to_hbm [thread:$0]  %s1002, 512, %s4, [#allocation5]
    $region29: #{tpu_custom_call.1} parent=1 // pred_fallthru
      _
    // Predicated region
    $region30: #{tpu_custom_call.1} parent=1 // pred_check
      _
    $region31: #{tpu_custom_call.1} parent=1 // pred_check_branch
      %1006 = sbr.rel (0) target = $region33
    $region32: #{tpu_custom_call.1} parent=1 // pred_region
      %1007 = dma.done [#allocation5], 512
    $region33: #{tpu_custom_call.1} parent=1 // pred_fallthru
      _
    %1008 = vsyncpa [#allocation4], 1
    %1009 = vsyncpa [#allocation7], 1
    %1010 = vsyncpa [#allocation5], 1

</llo_original>
